<compile_context>
chip_gen: v7x
topology: tpu7x:2x2x1
jax: 0.10.0
libtpu: 0.0.40
codegen_flags: <defaults>
</compile_context>

<pallas_src>
import functools

import jax
import jax.numpy as jnp
import numpy as np
from jax.experimental import pallas as pl
from jax.experimental.pallas import tpu as pltpu


def _attention_kernel(hid_ref, enc_ref, w1e_ref, w1h_ref, b1_ref,
                      w2_ref, b2_ref, w3_ref, out_ref, *, approx_recip):
    # hid_ref : (TB, H)       enc_ref : (TB, S, H)        (compute dtype)
    # w1e_ref : (H, H)        w1h_ref : (H, H)            (compute dtype)
    # w2_ref  : (H, H)                                    (compute dtype)
    # b1_ref  : (1, H)  b2_ref : (1, H)  w3_ref : (1, H)  (float32)
    # out_ref : (TB, H)
    TB, S, H = enc_ref.shape

    enc = enc_ref[...]                                   # (TB, S, H)
    enc_flat = enc.reshape(TB * S, H)                    # big M dim for the MXU
    hid = hid_ref[...]                                   # (TB, H)

    # ---- linear1 on concat([enc, hidden_rep], -1), split-weight form -------
    xh = (jnp.dot(hid, w1h_ref[...], preferred_element_type=jnp.float32)
          + b1_ref[...])                                 # (TB, H)      f32
    xe = jnp.dot(enc_flat, w1e_ref[...],
                 preferred_element_type=jnp.float32)     # (TB*S, H)    f32
    x = xe.reshape(TB, S, H) + xh[:, None, :]            # hidden broadcast over S
    x = x.reshape(TB * S, H)

    # ---- linear2 ------------------------------------------------------------
    x = (jnp.dot(x.astype(w2_ref.dtype), w2_ref[...],
                 preferred_element_type=jnp.float32)
         + b2_ref[...])                                  # (TB*S, H)    f32

    # ---- to_weight (no bias): VPU mul + lane reduce, not an (H,1) matmul ----
    scores = jnp.sum(x.reshape(TB, S, H) * w3_ref[...], axis=-1)   # (TB, S)

    # ---- softmax over the sequence axis (lane-major: S sits on lanes) ------
    m = jnp.max(scores, axis=-1, keepdims=True)          # (TB, 1)
    e = jnp.exp(scores - m)                              # (TB, S)
    denom = jnp.sum(e, axis=-1, keepdims=True)           # (TB, 1)
    attn = e * pl.reciprocal(denom, approx=approx_recip)  # (TB, S)

    # ---- context = bmm(attn.unsqueeze(1), enc).squeeze(1) -------------------
    ctx = jnp.sum(attn[:, :, None] * enc.astype(jnp.float32), axis=1)  # (TB, H)
    out_ref[...] = ctx.astype(out_ref.dtype)


def _pick_batch_block(B, S, H, target_rows=256, max_block_bytes=2 << 20):
    """Batches per grid step: TB*S >= target_rows (MXU-sized M), TB a multiple
    of 8 (sublane tiling of the (TB, H) blocks) unless TB == B, and the enc
    block small enough to double-buffer without touching the VMEM limit."""
    if B * S <= target_rows:
        return B
    tb = -(-target_rows // S)                 # ceil(target_rows / S)
    tb = ((tb + 7) // 8) * 8                  # round up to multiple of 8
    bytes_per_batch = S * H * 4
    cap = max(8, (max_block_bytes // max(bytes_per_batch, 1)) // 8 * 8)
    tb = min(tb, cap)
    return B if tb >= B else tb


def attention_pallas(hidden_state, encoder_outputs, params,
                     compute_dtype=jnp.float32, batch_block=None):
    B, S, H = encoder_outputs.shape
    out_dtype = encoder_outputs.dtype
    cdt = jnp.dtype(compute_dtype)

    w1, b1, w2, b2, w3 = (params["w1"], params["b1"], params["w2"],
                          params["b2"], params["w3"])
    # Pre-transpose so the kernel does plain row-major dots; cast MXU operands
    # to the compute dtype (bf16 halves weight/enc DMA bytes), keep biases and
    # the score row in f32 (they feed f32 post-matmul / VPU math).
    w1e_t = jnp.transpose(w1[:, :H]).astype(cdt)      # (H, H)  encoder half
    w1h_t = jnp.transpose(w1[:, H:]).astype(cdt)      # (H, H)  hidden half
    w2_t = jnp.transpose(w2).astype(cdt)              # (H, H)
    w3_row = w3.reshape(1, H).astype(jnp.float32)     # (1, H)
    b1_2d = b1.reshape(1, H).astype(jnp.float32)
    b2_2d = b2.reshape(1, H).astype(jnp.float32)

    hid = hidden_state.astype(cdt)
    enc = encoder_outputs.astype(cdt)

    TB = _pick_batch_block(B, S, H) if batch_block is None else batch_block
    n_blocks = pl.cdiv(B, TB)

    # approx reciprocal (EUP vrcp) only on the low-precision path.
    approx = cdt == jnp.dtype(jnp.bfloat16)
    kernel = functools.partial(_attention_kernel, approx_recip=approx)

    grid_spec = pltpu.PrefetchScalarGridSpec(
        num_scalar_prefetch=0,
        grid=(n_blocks,),
        in_specs=[
            pl.BlockSpec((TB, H), lambda b: (b, 0)),        # hidden_state
            pl.BlockSpec((TB, S, H), lambda b: (b, 0, 0)),  # encoder_outputs
            pl.BlockSpec((H, H), lambda b: (0, 0)),         # w1e_t
            pl.BlockSpec((H, H), lambda b: (0, 0)),         # w1h_t
            pl.BlockSpec((1, H), lambda b: (0, 0)),         # b1
            pl.BlockSpec((H, H), lambda b: (0, 0)),         # w2_t
            pl.BlockSpec((1, H), lambda b: (0, 0)),         # b2
            pl.BlockSpec((1, H), lambda b: (0, 0)),         # w3 row
        ],
        out_specs=pl.BlockSpec((TB, H), lambda b: (b, 0)),
    )

    return pl.pallas_call(
        kernel,
        out_shape=jax.ShapeDtypeStruct((B, H), out_dtype),
        grid_spec=grid_spec,
        compiler_params=pltpu.CompilerParams(
            dimension_semantics=("parallel",)),   # batch-block axis -> both TCs on v7x
    )(hid, enc, w1e_t, w1h_t, b1_2d, w2_t, b2_2d, w3_row)


def attention_reference(hidden_state, encoder_outputs, params):
    """Plain-JAX mirror of the PyTorch forward, for validation."""
    B, S, H = encoder_outputs.shape
    hid_rep = jnp.broadcast_to(hidden_state[:, None, :], (B, S, H))
    cat = jnp.concatenate([encoder_outputs, hid_rep], axis=2).reshape(-1, 2 * H)
    x = cat @ params["w1"].T + params["b1"]
    x = x @ params["w2"].T + params["b2"]
    scores = (x @ params["w3"].T).reshape(B, S)
    attn = jax.nn.softmax(scores, axis=1)
    ctx = jnp.einsum("bs,bsh->bh", attn, encoder_outputs)
    return ctx


def init_params(key, hidden_size):
    """Deterministic init mimicking nn.Linear default (uniform +/- 1/sqrt(fan_in))."""
    H = hidden_size
    k1, k2, k3, k4, k5 = jax.random.split(key, 5)
    bound1 = 1.0 / np.sqrt(2 * H)
    bound2 = 1.0 / np.sqrt(H)
    return {
        "w1": jax.random.uniform(k1, (H, 2 * H), jnp.float32, -bound1, bound1),
        "b1": jax.random.uniform(k2, (H,), jnp.float32, -bound1, bound1),
        "w2": jax.random.uniform(k3, (H, H), jnp.float32, -bound2, bound2),
        "b2": jax.random.uniform(k4, (H,), jnp.float32, -bound2, bound2),
        "w3": jax.random.uniform(k5, (1, H), jnp.float32, -bound2, bound2),
    }


if __name__ == "__main__":
    S, H = 8, 32
    key = jax.random.PRNGKey(0)
    kp, kh, ke = jax.random.split(key, 3)
    params = init_params(kp, H)

    # --- small shape, full-precision path (tight tolerance) -----------------
    B = 2
    hidden_state = jax.random.normal(kh, (B, H), jnp.float32)
    encoder_outputs = jax.random.normal(ke, (B, S, H), jnp.float32)

    out = attention_pallas(hidden_state, encoder_outputs, params)
    out = jax.block_until_ready(out)
    ref = attention_reference(hidden_state, encoder_outputs, params)
    np.testing.assert_allclose(np.asarray(out), np.asarray(ref),
                               rtol=1e-5, atol=1e-5)

    # --- larger batch exercises the batched grid + bf16 MXU path ------------
    B2 = 64
    kh2, ke2 = jax.random.split(jax.random.PRNGKey(1), 2)
    hid2 = jax.random.normal(kh2, (B2, H), jnp.float32)
    enc2 = jax.random.normal(ke2, (B2, S, H), jnp.float32)

    out2 = attention_pallas(hid2, enc2, params, compute_dtype=jnp.bfloat16)
    out2 = jax.block_until_ready(out2)
    ref2 = attention_reference(hid2, enc2, params)
    np.testing.assert_allclose(np.asarray(out2), np.asarray(ref2),
                               rtol=5e-2, atol=5e-2)

    print("KERNEL_OK")
</pallas_src>

<mosaic_0001>
module attributes {stable_mosaic.version = 11 : i64} {
  func.func @_attention_kernel(%arg0: i32, %arg1: memref<2x32xf32, #tpu.memory_space<vmem>>, %arg2: memref<2x8x32xf32, #tpu.memory_space<vmem>>, %arg3: memref<32x32xf32, #tpu.memory_space<vmem>>, %arg4: memref<32x32xf32, #tpu.memory_space<vmem>>, %arg5: memref<1x32xf32, #tpu.memory_space<vmem>>, %arg6: memref<32x32xf32, #tpu.memory_space<vmem>>, %arg7: memref<1x32xf32, #tpu.memory_space<vmem>>, %arg8: memref<1x32xf32, #tpu.memory_space<vmem>>, %arg9: memref<2x32xf32, #tpu.memory_space<vmem>>) attributes {dimension_semantics = [#tpu.dimension_semantics<parallel>], iteration_bounds = array<i64: 1>, scalar_prefetch = 0 : i64, scratch_operands = 0 : i64, tpu.core_type = #tpu.core_type<tc>, window_params = [{transform_indices = @transform_0, window_bounds = array<i64: 2, 32>}, {transform_indices = @transform_1, window_bounds = array<i64: 2, 8, 32>}, {pipeline_mode = #tpu.pipeline_mode<synchronous>, transform_indices = @transform_2, window_bounds = array<i64: 32, 32>}, {pipeline_mode = #tpu.pipeline_mode<synchronous>, transform_indices = @transform_3, window_bounds = array<i64: 32, 32>}, {pipeline_mode = #tpu.pipeline_mode<synchronous>, transform_indices = @transform_4, window_bounds = array<i64: 1, 32>}, {pipeline_mode = #tpu.pipeline_mode<synchronous>, transform_indices = @transform_5, window_bounds = array<i64: 32, 32>}, {pipeline_mode = #tpu.pipeline_mode<synchronous>, transform_indices = @transform_6, window_bounds = array<i64: 1, 32>}, {pipeline_mode = #tpu.pipeline_mode<synchronous>, transform_indices = @transform_7, window_bounds = array<i64: 1, 32>}, {transform_indices = @transform_8, window_bounds = array<i64: 2, 32>}]} {
    %c0 = arith.constant 0 : index
    %c0_0 = arith.constant 0 : index
    %c0_1 = arith.constant 0 : index
    %0 = vector.load %arg2[%c0, %c0_0, %c0_1] : memref<2x8x32xf32, #tpu.memory_space<vmem>>, vector<2x8x32xf32>
    %1 = vector.shape_cast %0 : vector<2x8x32xf32> to vector<16x32xf32>
    %c0_2 = arith.constant 0 : index
    %c0_3 = arith.constant 0 : index
    %2 = vector.load %arg1[%c0_2, %c0_3] : memref<2x32xf32, #tpu.memory_space<vmem>>, vector<2x32xf32>
    %c0_4 = arith.constant 0 : index
    %c0_5 = arith.constant 0 : index
    %3 = vector.load %arg4[%c0_4, %c0_5] : memref<32x32xf32, #tpu.memory_space<vmem>>, vector<32x32xf32>
    %cst = arith.constant dense<0.000000e+00> : vector<2x32xf32>
    %4 = tpu.matmul %2, %3, %cst {dimension_numbers = #tpu.dot_dimension_numbers<[1], [0], [0], [1], [0, 0, 1, 1], [], []>} : vector<2x32xf32>, vector<32x32xf32>, vector<2x32xf32> -> vector<2x32xf32>
    %c0_6 = arith.constant 0 : index
    %c0_7 = arith.constant 0 : index
    %5 = vector.load %arg5[%c0_6, %c0_7] : memref<1x32xf32, #tpu.memory_space<vmem>>, vector<1x32xf32>
    %6 = vector.broadcast %5 : vector<1x32xf32> to vector<2x32xf32>
    %7 = arith.addf %4, %6 : vector<2x32xf32>
    %c0_8 = arith.constant 0 : index
    %c0_9 = arith.constant 0 : index
    %8 = vector.load %arg3[%c0_8, %c0_9] : memref<32x32xf32, #tpu.memory_space<vmem>>, vector<32x32xf32>
    %cst_10 = arith.constant dense<0.000000e+00> : vector<16x32xf32>
    %9 = tpu.matmul %1, %8, %cst_10 {dimension_numbers = #tpu.dot_dimension_numbers<[1], [0], [0], [1], [0, 0, 1, 1], [], []>} : vector<16x32xf32>, vector<32x32xf32>, vector<16x32xf32> -> vector<16x32xf32>
    %10 = vector.shape_cast %9 : vector<16x32xf32> to vector<2x8x32xf32>
    %11 = vector.shape_cast %7 : vector<2x32xf32> to vector<2x1x32xf32>
    %12 = vector.broadcast %11 : vector<2x1x32xf32> to vector<2x8x32xf32>
    %13 = arith.addf %10, %12 : vector<2x8x32xf32>
    %14 = vector.shape_cast %13 : vector<2x8x32xf32> to vector<16x32xf32>
    %c0_11 = arith.constant 0 : index
    %c0_12 = arith.constant 0 : index
    %15 = vector.load %arg6[%c0_11, %c0_12] : memref<32x32xf32, #tpu.memory_space<vmem>>, vector<32x32xf32>
    %cst_13 = arith.constant dense<0.000000e+00> : vector<16x32xf32>
    %16 = tpu.matmul %14, %15, %cst_13 {dimension_numbers = #tpu.dot_dimension_numbers<[1], [0], [0], [1], [0, 0, 1, 1], [], []>} : vector<16x32xf32>, vector<32x32xf32>, vector<16x32xf32> -> vector<16x32xf32>
    %c0_14 = arith.constant 0 : index
    %c0_15 = arith.constant 0 : index
    %17 = vector.load %arg7[%c0_14, %c0_15] : memref<1x32xf32, #tpu.memory_space<vmem>>, vector<1x32xf32>
    %18 = vector.broadcast %17 : vector<1x32xf32> to vector<16x32xf32>
    %19 = arith.addf %16, %18 : vector<16x32xf32>
    %20 = vector.shape_cast %19 : vector<16x32xf32> to vector<2x8x32xf32>
    %c0_16 = arith.constant 0 : index
    %c0_17 = arith.constant 0 : index
    %21 = vector.load %arg8[%c0_16, %c0_17] : memref<1x32xf32, #tpu.memory_space<vmem>>, vector<1x32xf32>
    %22 = vector.shape_cast %21 : vector<1x32xf32> to vector<1x1x32xf32>
    %23 = vector.broadcast %22 : vector<1x1x32xf32> to vector<2x8x32xf32>
    %24 = arith.mulf %20, %23 : vector<2x8x32xf32>
    %cst_18 = arith.constant dense<0.000000e+00> : vector<2x8xf32>
    %25 = vector.multi_reduction <add>, %24, %cst_18 [2] : vector<2x8x32xf32> to vector<2x8xf32>
    %cst_19 = arith.constant dense<0xFF800000> : vector<2xf32>
    %26 = vector.multi_reduction <maximumf>, %25, %cst_19 [1] : vector<2x8xf32> to vector<2xf32>
    %27 = vector.shape_cast %26 : vector<2xf32> to vector<2x1xf32>
    %28 = vector.broadcast %27 : vector<2x1xf32> to vector<2x8xf32>
    %29 = arith.subf %25, %28 : vector<2x8xf32>
    %30 = math.exp %29 : vector<2x8xf32>
    %cst_20 = arith.constant dense<0.000000e+00> : vector<2xf32>
    %31 = vector.multi_reduction <add>, %30, %cst_20 [1] : vector<2x8xf32> to vector<2xf32>
    %32 = vector.shape_cast %31 : vector<2xf32> to vector<2x1xf32>
    %33 = tpu.reciprocal %32 : vector<2x1xf32> -> vector<2x1xf32>
    %34 = vector.broadcast %33 : vector<2x1xf32> to vector<2x8xf32>
    %35 = arith.mulf %30, %34 : vector<2x8xf32>
    %36 = vector.shape_cast %35 : vector<2x8xf32> to vector<2x8x1xf32>
    %37 = vector.broadcast %36 : vector<2x8x1xf32> to vector<2x8x32xf32>
    %38 = arith.mulf %37, %0 : vector<2x8x32xf32>
    %cst_21 = arith.constant dense<0.000000e+00> : vector<2x32xf32>
    %39 = vector.multi_reduction <add>, %38, %cst_21 [1] : vector<2x8x32xf32> to vector<2x32xf32>
    %c0_22 = arith.constant 0 : index
    %c0_23 = arith.constant 0 : index
    %40 = vector.load %arg9[%c0_22, %c0_23] : memref<2x32xf32, #tpu.memory_space<vmem>>, vector<2x32xf32>
    tpu.vector_store %arg9[%c0_22, %c0_23], %39 {strides = array<i32>} : memref<2x32xf32, #tpu.memory_space<vmem>>, vector<2x32xf32>,
    return
  }
  func.func @transform_0(%arg0: i32) -> (i32, i32) {
    %c0_i32 = arith.constant 0 : i32
    %c0_i32_0 = arith.constant 0 : i32
    return %arg0, %c0_i32 : i32, i32
  }
  func.func @transform_1(%arg0: i32) -> (i32, i32, i32) {
    %c0_i32 = arith.constant 0 : i32
    %c0_i32_0 = arith.constant 0 : i32
    %c0_i32_1 = arith.constant 0 : i32
    return %arg0, %c0_i32, %c0_i32_0 : i32, i32, i32
  }
  func.func @transform_2(%arg0: i32) -> (i32, i32) {
    %c0_i32 = arith.constant 0 : i32
    %c0_i32_0 = arith.constant 0 : i32
    %c0_i32_1 = arith.constant 0 : i32
    return %c0_i32, %c0_i32_0 : i32, i32
  }
  func.func @transform_3(%arg0: i32) -> (i32, i32) {
    %c0_i32 = arith.constant 0 : i32
    %c0_i32_0 = arith.constant 0 : i32
    %c0_i32_1 = arith.constant 0 : i32
    return %c0_i32, %c0_i32_0 : i32, i32
  }
  func.func @transform_4(%arg0: i32) -> (i32, i32) {
    %c0_i32 = arith.constant 0 : i32
    %c0_i32_0 = arith.constant 0 : i32
    %c0_i32_1 = arith.constant 0 : i32
    return %c0_i32, %c0_i32_0 : i32, i32
  }
  func.func @transform_5(%arg0: i32) -> (i32, i32) {
    %c0_i32 = arith.constant 0 : i32
    %c0_i32_0 = arith.constant 0 : i32
    %c0_i32_1 = arith.constant 0 : i32
    return %c0_i32, %c0_i32_0 : i32, i32
  }
  func.func @transform_6(%arg0: i32) -> (i32, i32) {
    %c0_i32 = arith.constant 0 : i32
    %c0_i32_0 = arith.constant 0 : i32
    %c0_i32_1 = arith.constant 0 : i32
    return %c0_i32, %c0_i32_0 : i32, i32
  }
  func.func @transform_7(%arg0: i32) -> (i32, i32) {
    %c0_i32 = arith.constant 0 : i32
    %c0_i32_0 = arith.constant 0 : i32
    %c0_i32_1 = arith.constant 0 : i32
    return %c0_i32, %c0_i32_0 : i32, i32
  }
  func.func @transform_8(%arg0: i32) -> (i32, i32) {
    %c0_i32 = arith.constant 0 : i32
    %c0_i32_0 = arith.constant 0 : i32
    return %arg0, %c0_i32 : i32, i32
  }
}

</mosaic_0001>

<llo_original>
// kernel: tpu_custom_call.1
$region0: #{tpu_custom_call.1}
  #allocation0 [shape = 'u32[]', space=smem, size = 0x4, offset = 0x4, fixed_abs, tag = 'smem constant byte address 0x4 - core index']
  #allocation1 [shape = 'u32[144,128]{1,0:T(1,128)}', space=vmem, size = 0x12000, scoped, tag = 'internal scratch']
  %s0 = inlined_call_operand.hbm [shape: f32[2,32], index: 0, kind: input, shape index: {}]
  %s1 = inlined_call_operand.hbm [shape: f32[2,8,32], index: 1, kind: input, shape index: {}]
  %s2 = inlined_call_operand.hbm [shape: f32[32,32], index: 2, kind: input, shape index: {}]
  %s3 = inlined_call_operand.hbm [shape: f32[32,32], index: 3, kind: input, shape index: {}]
  %s4 = inlined_call_operand.vmem [shape: f32[1,32], index: 4, kind: input, shape index: {}]
  %s5 = inlined_call_operand.hbm [shape: f32[32,32], index: 5, kind: input, shape index: {}]
  %s6 = inlined_call_operand.vmem [shape: f32[1,32], index: 6, kind: input, shape index: {}]
  %s7 = inlined_call_operand.vmem [shape: f32[1,32], index: 7, kind: input, shape index: {}]
  %s8 = inlined_call_operand.hbm [shape: f32[2,32], index: 8, kind: output, shape index: {}]
  %s9 = sld [smem:[#allocation0]]
  $region62: #{tpu_custom_call.1} parent=0
    _
  %s11 = ssub.s32 1, %s9
  %s12 = scalar_select 0, %s11, %s9
  $region1: #{tpu_custom_call.1} parent=0
    #allocation2 [shape = 'u8[1024]{0}', space=vmem, size = 0x400, scoped, tag = 'input window, operand 0, single buffered']
    #allocation3 [shape = 's32[1]{0}', space=sflag, size = 0x4, scoped, tag = 'scoped memory for tpu_custom_call.1']
    #allocation4 [shape = 's32[1]{0}', space=sflag, size = 0x4, scoped, tag = 'scoped memory for tpu_custom_call.1']
    #allocation5 [shape = 'u8[8192]{0}', space=vmem, size = 0x2000, scoped, tag = 'input window, operand 1, single buffered']
    #allocation6 [shape = 's32[1]{0}', space=sflag, size = 0x4, scoped, tag = 'scoped memory for tpu_custom_call.1']
    #allocation7 [shape = 'u8[16384]{0}', space=vmem, size = 0x4000, scoped, tag = 'input window, operand 2, single buffered']
    #allocation8 [shape = 'u8[16384]{0}', space=vmem, size = 0x4000, scoped, tag = 'input window, operand 3, single buffered']
    #allocation9 [shape = 's32[1]{0}', space=sflag, size = 0x4, scoped, tag = 'scoped memory for tpu_custom_call.1']
    #allocation10 [shape = 'u8[16384]{0}', space=vmem, size = 0x4000, scoped, tag = 'input window, operand 5, single buffered']
    #allocation11 [shape = 'u8[1024]{0}', space=vmem, size = 0x400, scoped, tag = 'output window, operand 0, single buffered']
    %13 = vsyncpa [#allocation3], 0
    %14 = vsyncpa [#allocation6], 0
    %15 = vsyncpa [#allocation9], 0
    %16 = vsyncpa [#allocation4], 0
    // Predicated region
    $region2: #{tpu_custom_call.1} parent=1 // pred_check
      _
    $region3: #{tpu_custom_call.1} parent=1 // pred_check_branch
      %18 = sbr.rel (0) target = $region5
    $region4: #{tpu_custom_call.1} parent=1 // pred_region
      %s20 = ssub.s32 32, 32
      %21 = vsyncadd [#allocation3], %s20
      %s23 = sshll.u32 [#allocation2], 4
      %s24 = int_to_ptr.vmem [resolvable:$true] %s23
      %26 = dma.hbm_to_vmem [thread:$0]  %s0, 32, %s24, [#allocation3]
    $region5: #{tpu_custom_call.1} parent=1 // pred_fallthru
      _
    // Predicated region
    $region6: #{tpu_custom_call.1} parent=1 // pred_check
      _
    $region7: #{tpu_custom_call.1} parent=1 // pred_check_branch
      %28 = sbr.rel (0) target = $region9
    $region8: #{tpu_custom_call.1} parent=1 // pred_region
      %s30 = ssub.s32 256, 256
      %31 = vsyncadd [#allocation6], %s30
      %s32 = sshll.u32 [#allocation5], 4
      %s33 = int_to_ptr.vmem [resolvable:$true] %s32
      %38 = dma.hbm_to_vmem [thread:$0]  %s1, 256, %s33, [#allocation6], 128, 128, 8
    $region9: #{tpu_custom_call.1} parent=1 // pred_fallthru
      _
    // Predicated region
    $region10: #{tpu_custom_call.1} parent=1 // pred_check
      _
    $region11: #{tpu_custom_call.1} parent=1 // pred_check_branch
      %40 = sbr.rel (0) target = $region13
    $region12: #{tpu_custom_call.1} parent=1 // pred_region
      %s42 = ssub.s32 512, 512
      %43 = vsyncadd [#allocation6], %s42
      %s44 = sshll.u32 [#allocation7], 4
      %s45 = int_to_ptr.vmem [resolvable:$true] %s44
      %50 = dma.hbm_to_vmem [thread:$0]  %s2, 512, %s45, [#allocation6], 128, 128, 8
    $region13: #{tpu_custom_call.1} parent=1 // pred_fallthru
      _
    // Predicated region
    $region14: #{tpu_custom_call.1} parent=1 // pred_check
      _
    $region15: #{tpu_custom_call.1} parent=1 // pred_check_branch
      %52 = sbr.rel (0) target = $region17
    $region16: #{tpu_custom_call.1} parent=1 // pred_region
      %s54 = ssub.s32 512, 512
      %55 = vsyncadd [#allocation9], %s54
      %s56 = sshll.u32 [#allocation8], 4
      %s57 = int_to_ptr.vmem [resolvable:$true] %s56
      %62 = dma.hbm_to_vmem [thread:$0]  %s3, 512, %s57, [#allocation9], 128, 128, 8
    $region17: #{tpu_custom_call.1} parent=1 // pred_fallthru
      _
    // Predicated region
    $region18: #{tpu_custom_call.1} parent=1 // pred_check
      _
    $region19: #{tpu_custom_call.1} parent=1 // pred_check_branch
      %64 = sbr.rel (0) target = $region21
    $region20: #{tpu_custom_call.1} parent=1 // pred_region
      _
    $region21: #{tpu_custom_call.1} parent=1 // pred_fallthru
      _
    // Predicated region
    $region22: #{tpu_custom_call.1} parent=1 // pred_check
      _
    $region23: #{tpu_custom_call.1} parent=1 // pred_check_branch
      %66 = sbr.rel (0) target = $region25
    $region24: #{tpu_custom_call.1} parent=1 // pred_region
      %s68 = ssub.s32 512, 512
      %69 = vsyncadd [#allocation9], %s68
      %s70 = sshll.u32 [#allocation10], 4
      %s71 = int_to_ptr.vmem [resolvable:$true] %s70
      %76 = dma.hbm_to_vmem [thread:$0]  %s5, 512, %s71, [#allocation9], 128, 128, 8
    $region25: #{tpu_custom_call.1} parent=1 // pred_fallthru
      _
    // Predicated region
    $region26: #{tpu_custom_call.1} parent=1 // pred_check
      _
    $region27: #{tpu_custom_call.1} parent=1 // pred_check_branch
      %78 = sbr.rel (0) target = $region29
    $region28: #{tpu_custom_call.1} parent=1 // pred_region
      _
    $region29: #{tpu_custom_call.1} parent=1 // pred_fallthru
      _
    // Predicated region
    $region30: #{tpu_custom_call.1} parent=1 // pred_check
      _
    $region31: #{tpu_custom_call.1} parent=1 // pred_check_branch
      %80 = sbr.rel (0) target = $region33
    $region32: #{tpu_custom_call.1} parent=1 // pred_region
      _
    $region33: #{tpu_custom_call.1} parent=1 // pred_fallthru
      _
    // Predicated region
    $region34: #{tpu_custom_call.1} parent=1 // pred_check
      _
    $region35: #{tpu_custom_call.1} parent=1 // pred_check_branch
      %82 = sbr.rel (0) target = $region37
    $region36: #{tpu_custom_call.1} parent=1 // pred_region
      %83 = dma.done [#allocation3], 32
    $region37: #{tpu_custom_call.1} parent=1 // pred_fallthru
      _
    // Predicated region
    $region38: #{tpu_custom_call.1} parent=1 // pred_check
      _
    $region39: #{tpu_custom_call.1} parent=1 // pred_check_branch
      %85 = sbr.rel (0) target = $region41
    $region40: #{tpu_custom_call.1} parent=1 // pred_region
      %86 = dma.done [#allocation6], 256
    $region41: #{tpu_custom_call.1} parent=1 // pred_fallthru
      _
    // Predicated region
    $region42: #{tpu_custom_call.1} parent=1 // pred_check
      _
    $region43: #{tpu_custom_call.1} parent=1 // pred_check_branch
      %88 = sbr.rel (0) target = $region45
    $region44: #{tpu_custom_call.1} parent=1 // pred_region
      %89 = dma.done [#allocation6], 512
    $region45: #{tpu_custom_call.1} parent=1 // pred_fallthru
      _
    // Predicated region
    $region46: #{tpu_custom_call.1} parent=1 // pred_check
      _
    $region47: #{tpu_custom_call.1} parent=1 // pred_check_branch
      %91 = sbr.rel (0) target = $region49
    $region48: #{tpu_custom_call.1} parent=1 // pred_region
      %92 = dma.done [#allocation9], 512
    $region49: #{tpu_custom_call.1} parent=1 // pred_fallthru
      _
    // Predicated region
    $region50: #{tpu_custom_call.1} parent=1 // pred_check
      _
    $region51: #{tpu_custom_call.1} parent=1 // pred_check_branch
      %94 = sbr.rel (0) target = $region53
    $region52: #{tpu_custom_call.1} parent=1 // pred_region
      %95 = dma.done [#allocation9], 512
    $region53: #{tpu_custom_call.1} parent=1 // pred_fallthru
      _
    %v96 = vld [vmem:[#allocation5] sm:$0xff]
    %v97 = vld [vmem:[#allocation5 + $0x8] sm:$0xff]
    %v98 = vld [vmem:[#allocation2] sm:$0x3]
    %v99 = vld [vmem:[#allocation8] sm:$0xff]
    %v100 = vld [vmem:[#allocation8 + $0x8] sm:$0xff]
    %v101 = vld [vmem:[#allocation8 + $0x10] sm:$0xff]
    %v102 = vld [vmem:[#allocation8 + $0x18] sm:$0xff]
    %v103 = vld [vmem:[%s4] sm:$0x1]
    %v105 = vlaneseq
    %v106 = vshrl.u32 %v105, 7
    %v107 = vsub.s32 0, %v106
    %v108 = vrot.slane %v103, %v107
    %vm110 = vcmask 261120
    %v112 = vsel %vm110, %v98, 0
    %114 = vmatprep.subr.mxu0 0.0
    %115 = vmatpush1.msra.mxu0 %v99
    %116 = vmatprep.subr.mxu0 0.0
    %117 = vmatpush1.msra.mxu0 %v100
    %118 = vmatprep.subr.mxu0 0.0
    %119 = vmatpush1.msra.mxu0 %v101
    %120 = vmatprep.subr.mxu0 0.0
    %121 = vmatpush1.msra.mxu0 %v102
    %122 = vmatprep.subr.mxu0 0.0
    %123 = vmatpush1.msra.mxu0 0.0
    %124 = vmatprep.subr.mxu0 0.0
    %125 = vmatpush1.msra.mxu0 0.0
    %126 = vmatprep.subr.mxu0 0.0
    %127 = vmatpush1.msra.mxu0 0.0
    %128 = vmatprep.subr.mxu0 0.0
    %129 = vmatpush1.msra.mxu0 0.0
    %130 = vmatprep.subr.mxu0 0.0
    %131 = vmatpush1.msra.mxu0 0.0
    %132 = vmatprep.subr.mxu0 0.0
    %133 = vmatpush1.msra.mxu0 0.0
    %134 = vmatprep.subr.mxu0 0.0
    %135 = vmatpush1.msra.mxu0 0.0
    %136 = vmatprep.subr.mxu0 0.0
    %137 = vmatpush1.msra.mxu0 0.0
    %138 = vmatprep.subr.mxu0 0.0
    %139 = vmatpush1.msra.mxu0 0.0
    %140 = vmatprep.subr.mxu0 0.0
    %141 = vmatpush1.msra.mxu0 0.0
    %142 = vmatprep.subr.mxu0 0.0
    %143 = vmatpush1.msra.mxu0 0.0
    %144 = vmatprep.subr.mxu0 0.0
    %145 = vmatpush1.msra.mxu0 0.0
    %146 = vmatprep.subr.mxu0 0.0
    %147 = vmatpush1.msra.mxu0 0.0
    %148 = vmatprep.subr.mxu0 0.0
    %149 = vmatpush1.msra.mxu0 0.0
    %150 = vmatprep.subr.mxu0 0.0
    %151 = vmatpush1.msra.mxu0 0.0
    %152 = vmatprep.subr.mxu0 0.0
    %153 = vmatpush1.msra.mxu0 0.0
    %154 = vmatprep.subr.mxu0 0.0
    %155 = vmatpush1.msra.mxu0 0.0
    %156 = vmatprep.subr.mxu0 0.0
    %157 = vmatpush1.msra.mxu0 0.0
    %158 = vmatprep.subr.mxu0 0.0
    %159 = vmatpush1.msra.mxu0 0.0
    %160 = vmatprep.subr.mxu0 0.0
    %161 = vmatpush1.msra.mxu0 0.0
    %162 = vmatprep.subr.mxu0 0.0
    %163 = vmatpush1.msra.mxu0 0.0
    %164 = vmatprep.subr.mxu0 0.0
    %165 = vmatpush1.msra.mxu0 0.0
    %166 = vmatprep.subr.mxu0 0.0
    %167 = vmatpush1.msra.mxu0 0.0
    %168 = vmatprep.subr.mxu0 0.0
    %169 = vmatpush1.msra.mxu0 0.0
    %170 = vmatprep.subr.mxu0 0.0
    %171 = vmatpush1.msra.mxu0 0.0
    %172 = vmatprep.subr.mxu0 0.0
    %173 = vmatpush1.msra.mxu0 0.0
    %174 = vmatprep.subr.mxu0 0.0
    %175 = vmatpush1.msra.mxu0 0.0
    %176 = vmatprep.subr.mxu0 0.0
    %177 = vmatpush1.msra.mxu0 0.0
    %178 = vmatprep.mubr.f32.mxu0 0.0
    %179 = vmatmul.mubr.f32.gmra.mrb[0].mxu0 %v112
    %v180 = vpop.f32.mrb[0].mxu0
    %v181 = vadd.f32 %v108, %v180
    %v182 = vpop.f32.mrb[0].mxu0
    %183 = vdwg.mxu0
    %v184 = vld [vmem:[#allocation7] sm:$0xff]
    %v185 = vld [vmem:[#allocation7 + $0x8] sm:$0xff]
    %v186 = vld [vmem:[#allocation7 + $0x10] sm:$0xff]
    %v187 = vld [vmem:[#allocation7 + $0x18] sm:$0xff]
    %v189 = vsel %vm110, %v96, 0
    %v192 = vsel %vm110, %v97, 0
    %194 = vmatprep.subr.mxu0 0.0
    %195 = vmatpush1.msra.mxu0 %v184
    %196 = vmatprep.subr.mxu0 0.0
    %197 = vmatpush1.msra.mxu0 %v185
    %198 = vmatprep.subr.mxu0 0.0
    %199 = vmatpush1.msra.mxu0 %v186
    %200 = vmatprep.subr.mxu0 0.0
    %201 = vmatpush1.msra.mxu0 %v187
    %202 = vmatprep.subr.mxu0 0.0
    %203 = vmatpush1.msra.mxu0 0.0
    %204 = vmatprep.subr.mxu0 0.0
    %205 = vmatpush1.msra.mxu0 0.0
    %206 = vmatprep.subr.mxu0 0.0
    %207 = vmatpush1.msra.mxu0 0.0
    %208 = vmatprep.subr.mxu0 0.0
    %209 = vmatpush1.msra.mxu0 0.0
    %210 = vmatprep.subr.mxu0 0.0
    %211 = vmatpush1.msra.mxu0 0.0
    %212 = vmatprep.subr.mxu0 0.0
    %213 = vmatpush1.msra.mxu0 0.0
    %214 = vmatprep.subr.mxu0 0.0
    %215 = vmatpush1.msra.mxu0 0.0
    %216 = vmatprep.subr.mxu0 0.0
    %217 = vmatpush1.msra.mxu0 0.0
    %218 = vmatprep.subr.mxu0 0.0
    %219 = vmatpush1.msra.mxu0 0.0
    %220 = vmatprep.subr.mxu0 0.0
    %221 = vmatpush1.msra.mxu0 0.0
    %222 = vmatprep.subr.mxu0 0.0
    %223 = vmatpush1.msra.mxu0 0.0
    %224 = vmatprep.subr.mxu0 0.0
    %225 = vmatpush1.msra.mxu0 0.0
    %226 = vmatprep.subr.mxu0 0.0
    %227 = vmatpush1.msra.mxu0 0.0
    %228 = vmatprep.subr.mxu0 0.0
    %229 = vmatpush1.msra.mxu0 0.0
    %230 = vmatprep.subr.mxu0 0.0
    %231 = vmatpush1.msra.mxu0 0.0
    %232 = vmatprep.subr.mxu0 0.0
    %233 = vmatpush1.msra.mxu0 0.0
    %234 = vmatprep.subr.mxu0 0.0
    %235 = vmatpush1.msra.mxu0 0.0
    %236 = vmatprep.subr.mxu0 0.0
    %237 = vmatpush1.msra.mxu0 0.0
    %238 = vmatprep.subr.mxu0 0.0
    %239 = vmatpush1.msra.mxu0 0.0
    %240 = vmatprep.subr.mxu0 0.0
    %241 = vmatpush1.msra.mxu0 0.0
    %242 = vmatprep.subr.mxu0 0.0
    %243 = vmatpush1.msra.mxu0 0.0
    %244 = vmatprep.subr.mxu0 0.0
    %245 = vmatpush1.msra.mxu0 0.0
    %246 = vmatprep.subr.mxu0 0.0
    %247 = vmatpush1.msra.mxu0 0.0
    %248 = vmatprep.subr.mxu0 0.0
    %249 = vmatpush1.msra.mxu0 0.0
    %250 = vmatprep.subr.mxu0 0.0
    %251 = vmatpush1.msra.mxu0 0.0
    %252 = vmatprep.subr.mxu0 0.0
    %253 = vmatpush1.msra.mxu0 0.0
    %254 = vmatprep.subr.mxu0 0.0
    %255 = vmatpush1.msra.mxu0 0.0
    %256 = vmatprep.subr.mxu0 0.0
    %257 = vmatpush1.msra.mxu0 0.0
    %258 = vmatprep.mubr.f32.mxu0 0.0
    %259 = vmatmul.mubr.f32.gmra.mrb[0].mxu0 %v189
    %v260 = vpop.f32.mrb[0].mxu0
    %v261 = vadd.f32 0.0, %v260
    %v262 = vpop.f32.mrb[0].mxu0
    %263 = vmatprep.mubr.f32.mxu0 0.0
    %264 = vmatmul.mubr.f32.gmra.mrb[0].mxu0 %v192
    %v265 = vpop.f32.mrb[0].mxu0
    %v266 = vadd.f32 0.0, %v265
    %v267 = vpop.f32.mrb[0].mxu0
    %268 = vdwg.mxu0
    %v271 = vunpack.c.l.s4 1966171168
    %v272 = vunpack.c.0.s8 %v271
    %v273 = vlaneseq
    %v274 = vshrl.u32 %v273, 7
    %v275 = vsub.s32 %v272, %v274
    %v276 = vrot.slane %v181, %v275
    %v277 = vcombine.high %v276, %v276
    %v279 = vunpack.c.l.s4 1966171168
    %v280 = vunpack.c.0.s8 %v279
    %v281 = vlaneseq
    %v282 = vshrl.u32 %v281, 7
    %v283 = vsub.s32 %v280, %v282
    %v284 = vrot.slane %v276, %v283
    %v286 = vunpack.c.l.s4 1966171168
    %v287 = vunpack.c.0.s8 %v286
    %v288 = vlaneseq
    %v289 = vshrl.u32 %v288, 7
    %v290 = vsub.s32 %v287, %v289
    %v291 = vrot.slane %v277, %v290
    %v292 = vlaneseq
    %v293 = vshrl.u32 %v292, 7
    %v294 = vsub.s32 0, %v293
    %v295 = vrot.slane %v284, %v294
    %v296 = vlaneseq
    %v297 = vshrl.u32 %v296, 7
    %v298 = vsub.s32 0, %v297
    %v299 = vrot.slane %v291, %v298
    %v302 = vadd.f32 %v261, %v295
    %v303 = vadd.f32 %v266, %v299
    %v304 = vld [vmem:[#allocation10] sm:$0xff]
    %v305 = vld [vmem:[#allocation10 + $0x8] sm:$0xff]
    %v306 = vld [vmem:[#allocation10 + $0x10] sm:$0xff]
    %v307 = vld [vmem:[#allocation10 + $0x18] sm:$0xff]
    %v308 = vld [vmem:[%s6] sm:$0x1]
    %v310 = vlaneseq
    %v311 = vshrl.u32 %v310, 7
    %v312 = vsub.s32 0, %v311
    %v313 = vrot.slane %v308, %v312
    %v316 = vsel %vm110, %v302, 0
    %v319 = vsel %vm110, %v303, 0
    %321 = vmatprep.subr.mxu0 0.0
    %322 = vmatpush1.msra.mxu0 %v304
    %323 = vmatprep.subr.mxu0 0.0
    %324 = vmatpush1.msra.mxu0 %v305
    %325 = vmatprep.subr.mxu0 0.0
    %326 = vmatpush1.msra.mxu0 %v306
    %327 = vmatprep.subr.mxu0 0.0
    %328 = vmatpush1.msra.mxu0 %v307
    %329 = vmatprep.subr.mxu0 0.0
    %330 = vmatpush1.msra.mxu0 0.0
    %331 = vmatprep.subr.mxu0 0.0
    %332 = vmatpush1.msra.mxu0 0.0
    %333 = vmatprep.subr.mxu0 0.0
    %334 = vmatpush1.msra.mxu0 0.0
    %335 = vmatprep.subr.mxu0 0.0
    %336 = vmatpush1.msra.mxu0 0.0
    %337 = vmatprep.subr.mxu0 0.0
    %338 = vmatpush1.msra.mxu0 0.0
    %339 = vmatprep.subr.mxu0 0.0
    %340 = vmatpush1.msra.mxu0 0.0
    %341 = vmatprep.subr.mxu0 0.0
    %342 = vmatpush1.msra.mxu0 0.0
    %343 = vmatprep.subr.mxu0 0.0
    %344 = vmatpush1.msra.mxu0 0.0
    %345 = vmatprep.subr.mxu0 0.0
    %346 = vmatpush1.msra.mxu0 0.0
    %347 = vmatprep.subr.mxu0 0.0
    %348 = vmatpush1.msra.mxu0 0.0
    %349 = vmatprep.subr.mxu0 0.0
    %350 = vmatpush1.msra.mxu0 0.0
    %351 = vmatprep.subr.mxu0 0.0
    %352 = vmatpush1.msra.mxu0 0.0
    %353 = vmatprep.subr.mxu0 0.0
    %354 = vmatpush1.msra.mxu0 0.0
    %355 = vmatprep.subr.mxu0 0.0
    %356 = vmatpush1.msra.mxu0 0.0
    %357 = vmatprep.subr.mxu0 0.0
    %358 = vmatpush1.msra.mxu0 0.0
    %359 = vmatprep.subr.mxu0 0.0
    %360 = vmatpush1.msra.mxu0 0.0
    %361 = vmatprep.subr.mxu0 0.0
    %362 = vmatpush1.msra.mxu0 0.0
    %363 = vmatprep.subr.mxu0 0.0
    %364 = vmatpush1.msra.mxu0 0.0
    %365 = vmatprep.subr.mxu0 0.0
    %366 = vmatpush1.msra.mxu0 0.0
    %367 = vmatprep.subr.mxu0 0.0
    %368 = vmatpush1.msra.mxu0 0.0
    %369 = vmatprep.subr.mxu0 0.0
    %370 = vmatpush1.msra.mxu0 0.0
    %371 = vmatprep.subr.mxu0 0.0
    %372 = vmatpush1.msra.mxu0 0.0
    %373 = vmatprep.subr.mxu0 0.0
    %374 = vmatpush1.msra.mxu0 0.0
    %375 = vmatprep.subr.mxu0 0.0
    %376 = vmatpush1.msra.mxu0 0.0
    %377 = vmatprep.subr.mxu0 0.0
    %378 = vmatpush1.msra.mxu0 0.0
    %379 = vmatprep.subr.mxu0 0.0
    %380 = vmatpush1.msra.mxu0 0.0
    %381 = vmatprep.subr.mxu0 0.0
    %382 = vmatpush1.msra.mxu0 0.0
    %383 = vmatprep.subr.mxu0 0.0
    %384 = vmatpush1.msra.mxu0 0.0
    %385 = vmatprep.mubr.f32.mxu0 0.0
    %386 = vmatmul.mubr.f32.gmra.mrb[0].mxu0 %v316
    %v387 = vpop.f32.mrb[0].mxu0
    %v388 = vadd.f32 %v313, %v387
    %v389 = vpop.f32.mrb[0].mxu0
    %390 = vmatprep.mubr.f32.mxu0 0.0
    %391 = vmatmul.mubr.f32.gmra.mrb[0].mxu0 %v319
    %v392 = vpop.f32.mrb[0].mxu0
    %v393 = vadd.f32 %v313, %v392
    %v394 = vpop.f32.mrb[0].mxu0
    %395 = vdwg.mxu0
    %v396 = vld [vmem:[%s7] sm:$0x1]
    %v398 = vlaneseq
    %v399 = vshrl.u32 %v398, 7
    %v400 = vsub.s32 0, %v399
    %v401 = vrot.slane %v396, %v400
    %v403 = vmul.f32 %v388, %v401
    %v404 = vmul.f32 %v393, %v401
    %v405 = vsel %vm110, %v403, 0.0
    %406 = vadd.xlane.f32.xlu0 %v405
    %v407 = vpop.xlane.xlu0 %406
    %v408 = vsel %vm110, %v404, 0.0
    %409 = vadd.xlane.f32.xlu0 %v408
    %v410 = vpop.xlane.xlu0 %409
    %v413 = vlaneseq
    %v414 = vand.u32 %v413, 127
    %v415 = vlaneseq
    %v416 = vshrl.u32 %v415, 7
    %v417 = vsub.s32 %v414, %v416
    %v418 = vrot.slane %v407, %v417
    %v419 = vlaneseq
    %v420 = vshrl.u32 %v419, 7
    %v421 = vsub.s32 %v414, %v420
    %v422 = vrot.slane %v410, %v421
    %vm423 = vcmask 1041409
    %v424 = vsel %vm423, %v422, %v418
    %vm426 = vcmask 58368
    %v427 = vsel %vm426, %v424, -inf
    %428 = vmax.xlane.f32.xlu0 %v427
    %v429 = vpop.xlane.xlu0 %428
    %v431 = vlaneseq
    %v432 = vshrl.u32 %v431, 7
    %v433 = vsub.s32 0, %v432
    %v434 = vrot.slane %v429, %v433
    %v435 = vlaneseq
    %v436 = vshrl.u32 %v435, 7
    %v437 = vsub.s32 1, %v436
    %v438 = vrot.slane %v429, %v437
    %v441 = vsub.f32 %v407, %v434
    %v442 = vsub.f32 %v410, %v438
    %v443 = vmul.f32 %v441, 1.442695
    %v444 = vpow.pop %v443
    %v445 = vmul.f32 %v442, 1.442695
    %v446 = vpow.pop %v445
    %449 = vset.pattern.permute.xlu0 0
    %450 = vperm.xlu0 %449, %v444
    %v451 = vpop.permute.xlu0 %450
    %452 = vset.pattern.permute.xlu0 0
    %453 = vperm.xlu0 %452, %v446
    %v454 = vpop.permute.xlu0 %453
    %v455 = vlaneseq
    %v456 = vshrl.u32 %v455, 7
    %v457 = vsub.s32 %v414, %v456
    %v458 = vrot.slane %v451, %v457
    %v459 = vlaneseq
    %v460 = vshrl.u32 %v459, 7
    %v461 = vsub.s32 %v414, %v460
    %v462 = vrot.slane %v454, %v461
    %v463 = vsel %vm423, %v462, %v458
    %v465 = vsel %vm426, %v463, 0.0
    %466 = vadd.xlane.f32.xlu0 %v465
    %v467 = vpop.xlane.xlu0 %466
    %v468 = vrcp.pop %v467
    %v470 = vlaneseq
    %v471 = vshrl.u32 %v470, 7
    %v472 = vsub.s32 0, %v471
    %v473 = vrot.slane %v468, %v472
    %v474 = vlaneseq
    %v475 = vshrl.u32 %v474, 7
    %v476 = vsub.s32 1, %v475
    %v477 = vrot.slane %v468, %v476
    %v480 = vmul.f32 %v444, %v473
    %v481 = vmul.f32 %v446, %v477
    %483 = vset.pattern.permute.xlu0 0
    %484 = vperm.xlu0 %483, %v480
    %v485 = vpop.permute.xlu0 %484
    %488 = vset.pattern.permute.xlu0 0
    %489 = vperm.xlu0 %488, %v481
    %v490 = vpop.permute.xlu0 %489
    %v492 = vmul.f32 %v485, %v96
    %v493 = vmul.f32 %v490, %v97
    %v494 = vsel %vm110, %v492, 0.0
    %v495 = vrot.slane %v494, 4
    %v496 = vadd.f32 %v494, %v495
    %v497 = vrot.slane %v496, 2
    %v498 = vadd.f32 %v496, %v497
    %v499 = vrot.slane %v498, 1
    %v500 = vadd.f32 %v498, %v499
    %v501 = vsel %vm110, %v493, 0.0
    %v502 = vrot.slane %v501, 4
    %v503 = vadd.f32 %v501, %v502
    %v504 = vrot.slane %v503, 2
    %v505 = vadd.f32 %v503, %v504
    %v506 = vrot.slane %v505, 1
    %v507 = vadd.f32 %v505, %v506
    %v510 = vsel %vm423, %v507, %v500
    %vm512 = vcmask 254976
    %513 = vst.msk [vmem:[#allocation11] sm:$0x3] %vm512, %v510
    // Predicated region
    $region54: #{tpu_custom_call.1} parent=1 // pred_check
      _
    $region55: #{tpu_custom_call.1} parent=1 // pred_check_branch
      %515 = sbr.rel (0) target = $region57
    $region56: #{tpu_custom_call.1} parent=1 // pred_region
      %s517 = ssub.s32 32, 32
      %518 = vsyncadd [#allocation4], %s517
      %s520 = sshll.u32 [#allocation11], 4
      %s521 = int_to_ptr.vmem [resolvable:$true] %s520
      %523 = dma.vmem_to_hbm [thread:$0]  %s521, 32, %s8, [#allocation4]
    $region57: #{tpu_custom_call.1} parent=1 // pred_fallthru
      _
    // Predicated region
    $region58: #{tpu_custom_call.1} parent=1 // pred_check
      _
    $region59: #{tpu_custom_call.1} parent=1 // pred_check_branch
      %525 = sbr.rel (0) target = $region61
    $region60: #{tpu_custom_call.1} parent=1 // pred_region
      %526 = dma.done [#allocation4], 32
    $region61: #{tpu_custom_call.1} parent=1 // pred_fallthru
      _
    %527 = vsyncpa [#allocation3], 1
    %528 = vsyncpa [#allocation6], 1
    %529 = vsyncpa [#allocation9], 1
    %530 = vsyncpa [#allocation4], 1

</llo_original>
